<compile_context>
chip_gen: v6e
topology: v6e:2x2x1
jax: 0.10.0
libtpu: 0.0.40
codegen_flags: <defaults>
</compile_context>

<pallas_src>
import functools

import jax
import jax.numpy as jnp
from jax.experimental import pallas as pl
from jax.experimental.pallas import tpu as pltpu

_LOSS_WEIGHTS = (0.7, 0.1, 0.2)
_TILE_B = 2048          # batch rows per grid step (per perf review)
_NUM_PARTITIONS = 2     # leading "parallel" axis: 2 TCs on v7x, no-op cost on 1-TC chips
_F32_MIN = float(jnp.finfo(jnp.float32).min)


def _loss_combine_kernel(x_ref, y_ref, out_ref, acc_ref, *,
                         batch, tb, n_steps, offsets, sizes, needs_mask):
    """One grid step: packed (tb, C1+C2+C3) logits -> per-head CE partial sums."""
    p = pl.program_id(0)          # batch partition (parallel axis)
    i = pl.program_id(1)          # accumulation step inside the partition

    @pl.when(i == 0)
    def _init():
        acc_ref[...] = jnp.zeros_like(acc_ref)

    x = x_ref[...].astype(jnp.float32)        # cast once, inside VMEM
    y = y_ref[...]                            # (tb, 3) int32 labels, one DMA for all heads
    # NOTE: int16 labels would shave a little VMEM; kept int32 because real head
    # sizes (e.g. 168 grapheme roots) exceed int8 and the saving is minor.

    # One shared class-index iota over the packed tile (reused by all heads).
    lane = jax.lax.broadcasted_iota(jnp.int32, x.shape, 1)

    masks, maxes = [], []
    for off, size in zip(offsets, sizes):
        m = (lane >= off) & (lane < off + size)
        masks.append(m)
        maxes.append(jnp.max(jnp.where(m, x, _F32_MIN), axis=-1, keepdims=True))

    # Per-lane "max of my head" so a SINGLE exp pass covers all three heads.
    lane_max = jnp.where(masks[0], maxes[0],
                         jnp.where(masks[1], maxes[1], maxes[2]))
    e = jnp.exp(x - lane_max)

    cols = []
    for h, off in enumerate(offsets):
        s_h = jnp.sum(jnp.where(masks[h], e, 0.0), axis=-1, keepdims=True)   # (tb, 1)
        lse_h = jnp.log(s_h) + maxes[h]
        tgt = y[:, h:h + 1] + off                       # label index in packed lane space
        # Out-of-range labels silently contribute picked=0 (loss = lse) instead of
        # erroring like torch.nn.CrossEntropyLoss.
        picked = jnp.sum(jnp.where(lane == tgt, x, 0.0), axis=-1, keepdims=True)
        cols.append(lse_h - picked)                     # -log p(label), (tb, 1)

    # (tb, 3) per-sample losses (one column per head) built with where+iota
    # (avoids a lane-concatenate).
    col_idx = jax.lax.broadcasted_iota(jnp.int32, (x.shape[0], 3), 1)
    ps = jnp.where(col_idx == 0, cols[0],
                   jnp.where(col_idx == 1, cols[1], cols[2]))

    if needs_mask:
        # Zero padded tail rows / duplicated tail blocks BEFORE any cross-row
        # reduction (mask must precede the row-sum; see correctness notes).
        blk = p * n_steps + i
        row = blk * tb + jax.lax.broadcasted_iota(jnp.int32, (x.shape[0], 1), 0)
        ps = jnp.where(row < batch, ps, 0.0)

    # Vector-domain accumulation: pure VPU adds each step; all cross-row
    # reductions and the output store are deferred to the single finalize.
    acc_ref[...] += ps

    @pl.when(i == n_steps - 1)
    def _finalize():
        head_sums = jnp.sum(acc_ref[...], axis=0, keepdims=True)   # (1, 3)
        out_ref[...] = head_sums.reshape(1, 1, 3)


def loss_combine(inputs, target, reduction="mean"):
    """JAX/Pallas equivalent of Loss_combine.forward, fused into one kernel."""
    x1, x2, x3 = inputs
    batch = x1.shape[0]
    sizes = (x1.shape[1], x2.shape[1], x3.shape[1])
    offsets = (0, sizes[0], sizes[0] + sizes[1])
    packed_c = sum(sizes)

    # TODO(synk): ideally the model emits the three heads already concatenated so
    # this (cheap, fusable) HBM concat pass disappears; the loss API hands us 3 arrays.
    x_packed = jnp.concatenate([x1, x2, x3], axis=1)    # (B, C1+C2+C3), native dtype
    y = target.astype(jnp.int32)                        # like torch .long()

    if reduction == "mean":
        scale = 1.0 / batch
    elif reduction == "sum":
        scale = 1.0
    else:
        # TODO(synk): reduction='none' (per-sample, unreduced output) not implemented.
        raise NotImplementedError(f"reduction={reduction!r} is not supported")

    tb = batch if batch <= _TILE_B else _TILE_B
    total_blocks = pl.cdiv(batch, tb)
    parts = _NUM_PARTITIONS if total_blocks >= _NUM_PARTITIONS else 1
    n_steps = pl.cdiv(total_blocks, parts)
    needs_mask = (batch % tb != 0) or (parts * n_steps != total_blocks)

    def block_idx(p, i):
        # Clamp so duplicated tail steps re-read the last valid block; their
        # contribution is zeroed by the in-kernel row mask.
        return (jnp.minimum(p * n_steps + i, total_blocks - 1), 0)

    kernel = functools.partial(
        _loss_combine_kernel, batch=batch, tb=tb, n_steps=n_steps,
        offsets=offsets, sizes=sizes, needs_mask=needs_mask)

    partials = pl.pallas_call(
        kernel,
        out_shape=jax.ShapeDtypeStruct((parts, 1, 3), jnp.float32),
        grid=(parts, n_steps),
        in_specs=[
            pl.BlockSpec((tb, packed_c), block_idx),   # packed logits slab
            pl.BlockSpec((tb, 3), block_idx),          # all labels in one block
        ],
        out_specs=pl.BlockSpec((1, 1, 3), lambda p, i: (p, 0, 0)),
        scratch_shapes=[pltpu.VMEM((tb, 3), jnp.float32)],   # per-head vector accumulator
        compiler_params=pltpu.CompilerParams(
            dimension_semantics=("parallel", "arbitrary"),
            vmem_limit_bytes=32 * 1024 * 1024,         # headroom vs v5e's 16 MiB default
        ),
    )(x_packed, y)

    # Trivial cross-partition combine + weighting + 1/B on the host/XLA side.
    head_sums = jnp.sum(partials[:, 0, :], axis=0)      # (3,)
    w = jnp.asarray(_LOSS_WEIGHTS, dtype=jnp.float32)
    return jnp.dot(w, head_sums) * jnp.float32(scale)


def _reference_loss(x1, x2, x3, target):
    def ce(logits, labels):
        logp = jax.nn.log_softmax(logits.astype(jnp.float32), axis=-1)
        return -jnp.mean(jnp.take_along_axis(logp, labels[:, None], axis=-1))
    return (0.7 * ce(x1, target[:, 0])
            + 0.1 * ce(x2, target[:, 1])
            + 0.2 * ce(x3, target[:, 2]))


if __name__ == "__main__":
    key = jax.random.PRNGKey(0)
    k1, k2, k3, ky = jax.random.split(key, 4)

    # --- small-shape check (single block, no masking) ---
    B = 8
    C1, C2, C3 = 16, 11, 7   # three classification heads (root / vowel / consonant)

    x1 = jax.random.normal(k1, (B, C1), dtype=jnp.float32)
    x2 = jax.random.normal(k2, (B, C2), dtype=jnp.float32)
    x3 = jax.random.normal(k3, (B, C3), dtype=jnp.float32)
    y1 = jax.random.randint(ky, (B,), 0, C1)
    y2 = jax.random.randint(jax.random.fold_in(ky, 1), (B,), 0, C2)
    y3 = jax.random.randint(jax.random.fold_in(ky, 2), (B,), 0, C3)
    target = jnp.stack([y1, y2, y3], axis=1)            # (B, 3)

    loss = loss_combine((x1, x2, x3), target, reduction="mean")
    jax.block_until_ready(loss)
    ref = _reference_loss(x1, x2, x3, target)
    assert jnp.allclose(loss, ref, rtol=1e-5, atol=1e-5), (loss, ref)

    # --- larger batch: exercises multi-block grid, parallel split and tail mask ---
    B2 = 2500
    xb1 = jax.random.normal(jax.random.fold_in(k1, 7), (B2, C1), dtype=jnp.float32)
    xb2 = jax.random.normal(jax.random.fold_in(k2, 7), (B2, C2), dtype=jnp.float32)
    xb3 = jax.random.normal(jax.random.fold_in(k3, 7), (B2, C3), dtype=jnp.float32)
    yb = jnp.stack([
        jax.random.randint(jax.random.fold_in(ky, 10), (B2,), 0, C1),
        jax.random.randint(jax.random.fold_in(ky, 11), (B2,), 0, C2),
        jax.random.randint(jax.random.fold_in(ky, 12), (B2,), 0, C3),
    ], axis=1)
    loss_big = loss_combine((xb1, xb2, xb3), yb, reduction="mean")
    jax.block_until_ready(loss_big)
    ref_big = _reference_loss(xb1, xb2, xb3, yb)
    assert jnp.allclose(loss_big, ref_big, rtol=1e-4, atol=1e-4), (loss_big, ref_big)

    print("KERNEL_OK")
</pallas_src>

<mosaic_0001>
module attributes {stable_mosaic.version = 11 : i64} {
  func.func @_loss_combine_kernel(%arg0: i32, %arg1: i32, %arg2: memref<8x34xf32, #tpu.memory_space<vmem>>, %arg3: memref<8x3xi32, #tpu.memory_space<vmem>>, %arg4: memref<1x1x3xf32, #tpu.memory_space<vmem>>, %arg5: memref<8x3xf32, #tpu.memory_space<vmem>>) attributes {dimension_semantics = [#tpu.dimension_semantics<parallel>, #tpu.dimension_semantics<arbitrary>], iteration_bounds = array<i64: 1, 1>, scalar_prefetch = 0 : i64, scratch_operands = 1 : i64, tpu.core_type = #tpu.core_type<tc>, window_params = [{transform_indices = @transform_0, window_bounds = array<i64: 8, 34>}, {transform_indices = @transform_1, window_bounds = array<i64: 8, 3>}, {transform_indices = @transform_2, window_bounds = array<i64: 1, 1, 3>}]} {
    %c0_i32 = arith.constant 0 : i32
    %0 = arith.cmpi eq, %arg1, %c0_i32 : i32
    %1 = arith.extui %0 : i1 to i32
    %c0_i32_0 = arith.constant 0 : i32
    %2 = arith.cmpi ne, %1, %c0_i32_0 : i32
    scf.if %2 {
      %cst_34 = arith.constant 0.000000e+00 : f32
      %110 = vector.broadcast %cst_34 : f32 to vector<8x3xf32>
      %c0_35 = arith.constant 0 : index
      %c0_36 = arith.constant 0 : index
      %111 = vector.load %arg5[%c0_35, %c0_36] : memref<8x3xf32, #tpu.memory_space<vmem>>, vector<8x3xf32>
      tpu.vector_store %arg5[%c0_35, %c0_36], %110 {strides = array<i32>} : memref<8x3xf32, #tpu.memory_space<vmem>>, vector<8x3xf32>,
    } else {
    }
    %c0 = arith.constant 0 : index
    %c0_1 = arith.constant 0 : index
    %3 = vector.load %arg2[%c0, %c0_1] : memref<8x34xf32, #tpu.memory_space<vmem>>, vector<8x34xf32>
    %c0_2 = arith.constant 0 : index
    %c0_3 = arith.constant 0 : index
    %4 = vector.load %arg3[%c0_2, %c0_3] : memref<8x3xi32, #tpu.memory_space<vmem>>, vector<8x3xi32>
    %5 = tpu.iota {dimensions = array<i32: 1>} : vector<8x34xi32>
    %c0_i32_4 = arith.constant 0 : i32
    %6 = vector.broadcast %c0_i32_4 : i32 to vector<8x34xi32>
    %7 = arith.cmpi sge, %5, %6 : vector<8x34xi32>
    %c16_i32 = arith.constant 16 : i32
    %8 = vector.broadcast %c16_i32 : i32 to vector<8x34xi32>
    %9 = arith.cmpi slt, %5, %8 : vector<8x34xi32>
    %10 = arith.andi %7, %9 : vector<8x34xi1>
    %cst = arith.constant -3.40282347E+38 : f32
    %11 = vector.broadcast %cst : f32 to vector<8x34xf32>
    %12 = arith.select %10, %3, %11 : vector<8x34xi1>, vector<8x34xf32>
    %cst_5 = arith.constant dense<0xFF800000> : vector<8xf32>
    %13 = vector.multi_reduction <maximumf>, %12, %cst_5 [1] : vector<8x34xf32> to vector<8xf32>
    %14 = vector.shape_cast %13 : vector<8xf32> to vector<8x1xf32>
    %c16_i32_6 = arith.constant 16 : i32
    %15 = vector.broadcast %c16_i32_6 : i32 to vector<8x34xi32>
    %16 = arith.cmpi sge, %5, %15 : vector<8x34xi32>
    %c27_i32 = arith.constant 27 : i32
    %17 = vector.broadcast %c27_i32 : i32 to vector<8x34xi32>
    %18 = arith.cmpi slt, %5, %17 : vector<8x34xi32>
    %19 = arith.andi %16, %18 : vector<8x34xi1>
    %cst_7 = arith.constant -3.40282347E+38 : f32
    %20 = vector.broadcast %cst_7 : f32 to vector<8x34xf32>
    %21 = arith.select %19, %3, %20 : vector<8x34xi1>, vector<8x34xf32>
    %cst_8 = arith.constant dense<0xFF800000> : vector<8xf32>
    %22 = vector.multi_reduction <maximumf>, %21, %cst_8 [1] : vector<8x34xf32> to vector<8xf32>
    %23 = vector.shape_cast %22 : vector<8xf32> to vector<8x1xf32>
    %c27_i32_9 = arith.constant 27 : i32
    %24 = vector.broadcast %c27_i32_9 : i32 to vector<8x34xi32>
    %25 = arith.cmpi sge, %5, %24 : vector<8x34xi32>
    %c34_i32 = arith.constant 34 : i32
    %26 = vector.broadcast %c34_i32 : i32 to vector<8x34xi32>
    %27 = arith.cmpi slt, %5, %26 : vector<8x34xi32>
    %28 = arith.andi %25, %27 : vector<8x34xi1>
    %cst_10 = arith.constant -3.40282347E+38 : f32
    %29 = vector.broadcast %cst_10 : f32 to vector<8x34xf32>
    %30 = arith.select %28, %3, %29 : vector<8x34xi1>, vector<8x34xf32>
    %cst_11 = arith.constant dense<0xFF800000> : vector<8xf32>
    %31 = vector.multi_reduction <maximumf>, %30, %cst_11 [1] : vector<8x34xf32> to vector<8xf32>
    %32 = vector.shape_cast %31 : vector<8xf32> to vector<8x1xf32>
    %33 = vector.shape_cast %23 : vector<8x1xf32> to vector<8x1xf32>
    %34 = vector.broadcast %33 : vector<8x1xf32> to vector<8x34xf32>
    %35 = vector.shape_cast %32 : vector<8x1xf32> to vector<8x1xf32>
    %36 = vector.broadcast %35 : vector<8x1xf32> to vector<8x34xf32>
    %37 = arith.select %19, %34, %36 : vector<8x34xi1>, vector<8x34xf32>
    %38 = vector.shape_cast %14 : vector<8x1xf32> to vector<8x1xf32>
    %39 = vector.broadcast %38 : vector<8x1xf32> to vector<8x34xf32>
    %40 = arith.select %10, %39, %37 : vector<8x34xi1>, vector<8x34xf32>
    %41 = arith.subf %3, %40 : vector<8x34xf32>
    %42 = math.exp %41 : vector<8x34xf32>
    %cst_12 = arith.constant 0.000000e+00 : f32
    %43 = vector.broadcast %cst_12 : f32 to vector<8x34xf32>
    %44 = arith.select %10, %42, %43 : vector<8x34xi1>, vector<8x34xf32>
    %cst_13 = arith.constant dense<0.000000e+00> : vector<8xf32>
    %45 = vector.multi_reduction <add>, %44, %cst_13 [1] : vector<8x34xf32> to vector<8xf32>
    %46 = vector.shape_cast %45 : vector<8xf32> to vector<8x1xf32>
    %47 = math.log %46 : vector<8x1xf32>
    %48 = arith.addf %47, %14 : vector<8x1xf32>
    %49 = vector.extract_strided_slice %4 {offsets = [0, 0], sizes = [8, 1], strides = [1, 1]} : vector<8x3xi32> to vector<8x1xi32>
    %c0_i32_14 = arith.constant 0 : i32
    %50 = vector.broadcast %c0_i32_14 : i32 to vector<8x1xi32>
    %51 = arith.addi %49, %50 : vector<8x1xi32>
    %52 = vector.broadcast %51 : vector<8x1xi32> to vector<8x34xi32>
    %53 = arith.cmpi eq, %5, %52 : vector<8x34xi32>
    %cst_15 = arith.constant 0.000000e+00 : f32
    %54 = vector.broadcast %cst_15 : f32 to vector<8x34xf32>
    %55 = arith.select %53, %3, %54 : vector<8x34xi1>, vector<8x34xf32>
    %cst_16 = arith.constant dense<0.000000e+00> : vector<8xf32>
    %56 = vector.multi_reduction <add>, %55, %cst_16 [1] : vector<8x34xf32> to vector<8xf32>
    %57 = vector.shape_cast %56 : vector<8xf32> to vector<8x1xf32>
    %58 = arith.subf %48, %57 : vector<8x1xf32>
    %cst_17 = arith.constant 0.000000e+00 : f32
    %59 = vector.broadcast %cst_17 : f32 to vector<8x34xf32>
    %60 = arith.select %19, %42, %59 : vector<8x34xi1>, vector<8x34xf32>
    %cst_18 = arith.constant dense<0.000000e+00> : vector<8xf32>
    %61 = vector.multi_reduction <add>, %60, %cst_18 [1] : vector<8x34xf32> to vector<8xf32>
    %62 = vector.shape_cast %61 : vector<8xf32> to vector<8x1xf32>
    %63 = math.log %62 : vector<8x1xf32>
    %64 = arith.addf %63, %23 : vector<8x1xf32>
    %65 = vector.extract_strided_slice %4 {offsets = [0, 1], sizes = [8, 1], strides = [1, 1]} : vector<8x3xi32> to vector<8x1xi32>
    %c16_i32_19 = arith.constant 16 : i32
    %66 = vector.broadcast %c16_i32_19 : i32 to vector<8x1xi32>
    %67 = arith.addi %65, %66 : vector<8x1xi32>
    %68 = vector.broadcast %67 : vector<8x1xi32> to vector<8x34xi32>
    %69 = arith.cmpi eq, %5, %68 : vector<8x34xi32>
    %cst_20 = arith.constant 0.000000e+00 : f32
    %70 = vector.broadcast %cst_20 : f32 to vector<8x34xf32>
    %71 = arith.select %69, %3, %70 : vector<8x34xi1>, vector<8x34xf32>
    %cst_21 = arith.constant dense<0.000000e+00> : vector<8xf32>
    %72 = vector.multi_reduction <add>, %71, %cst_21 [1] : vector<8x34xf32> to vector<8xf32>
    %73 = vector.shape_cast %72 : vector<8xf32> to vector<8x1xf32>
    %74 = arith.subf %64, %73 : vector<8x1xf32>
    %cst_22 = arith.constant 0.000000e+00 : f32
    %75 = vector.broadcast %cst_22 : f32 to vector<8x34xf32>
    %76 = arith.select %28, %42, %75 : vector<8x34xi1>, vector<8x34xf32>
    %cst_23 = arith.constant dense<0.000000e+00> : vector<8xf32>
    %77 = vector.multi_reduction <add>, %76, %cst_23 [1] : vector<8x34xf32> to vector<8xf32>
    %78 = vector.shape_cast %77 : vector<8xf32> to vector<8x1xf32>
    %79 = math.log %78 : vector<8x1xf32>
    %80 = arith.addf %79, %32 : vector<8x1xf32>
    %81 = vector.extract_strided_slice %4 {offsets = [0, 2], sizes = [8, 1], strides = [1, 1]} : vector<8x3xi32> to vector<8x1xi32>
    %c27_i32_24 = arith.constant 27 : i32
    %82 = vector.broadcast %c27_i32_24 : i32 to vector<8x1xi32>
    %83 = arith.addi %81, %82 : vector<8x1xi32>
    %84 = vector.broadcast %83 : vector<8x1xi32> to vector<8x34xi32>
    %85 = arith.cmpi eq, %5, %84 : vector<8x34xi32>
    %cst_25 = arith.constant 0.000000e+00 : f32
    %86 = vector.broadcast %cst_25 : f32 to vector<8x34xf32>
    %87 = arith.select %85, %3, %86 : vector<8x34xi1>, vector<8x34xf32>
    %cst_26 = arith.constant dense<0.000000e+00> : vector<8xf32>
    %88 = vector.multi_reduction <add>, %87, %cst_26 [1] : vector<8x34xf32> to vector<8xf32>
    %89 = vector.shape_cast %88 : vector<8xf32> to vector<8x1xf32>
    %90 = arith.subf %80, %89 : vector<8x1xf32>
    %91 = tpu.iota {dimensions = array<i32: 1>} : vector<8x3xi32>
    %c0_i32_27 = arith.constant 0 : i32
    %92 = vector.broadcast %c0_i32_27 : i32 to vector<8x3xi32>
    %93 = arith.cmpi eq, %91, %92 : vector<8x3xi32>
    %c1_i32 = arith.constant 1 : i32
    %94 = vector.broadcast %c1_i32 : i32 to vector<8x3xi32>
    %95 = arith.cmpi eq, %91, %94 : vector<8x3xi32>
    %96 = vector.shape_cast %74 : vector<8x1xf32> to vector<8x1xf32>
    %97 = vector.broadcast %96 : vector<8x1xf32> to vector<8x3xf32>
    %98 = vector.shape_cast %90 : vector<8x1xf32> to vector<8x1xf32>
    %99 = vector.broadcast %98 : vector<8x1xf32> to vector<8x3xf32>
    %100 = arith.select %95, %97, %99 : vector<8x3xi1>, vector<8x3xf32>
    %101 = vector.shape_cast %58 : vector<8x1xf32> to vector<8x1xf32>
    %102 = vector.broadcast %101 : vector<8x1xf32> to vector<8x3xf32>
    %103 = arith.select %93, %102, %100 : vector<8x3xi1>, vector<8x3xf32>
    %c0_28 = arith.constant 0 : index
    %c0_29 = arith.constant 0 : index
    %104 = vector.load %arg5[%c0_28, %c0_29] : memref<8x3xf32, #tpu.memory_space<vmem>>, vector<8x3xf32>
    %105 = arith.addf %104, %103 : vector<8x3xf32>
    %c0_30 = arith.constant 0 : index
    %c0_31 = arith.constant 0 : index
    %106 = vector.load %arg5[%c0_30, %c0_31] : memref<8x3xf32, #tpu.memory_space<vmem>>, vector<8x3xf32>
    tpu.vector_store %arg5[%c0_30, %c0_31], %105 {strides = array<i32>} : memref<8x3xf32, #tpu.memory_space<vmem>>, vector<8x3xf32>,
    %c0_i32_32 = arith.constant 0 : i32
    %107 = arith.cmpi eq, %arg1, %c0_i32_32 : i32
    %108 = arith.extui %107 : i1 to i32
    %c0_i32_33 = arith.constant 0 : i32
    %109 = arith.cmpi ne, %108, %c0_i32_33 : i32
    scf.if %109 {
      %c0_34 = arith.constant 0 : index
      %c0_35 = arith.constant 0 : index
      %110 = vector.load %arg5[%c0_34, %c0_35] : memref<8x3xf32, #tpu.memory_space<vmem>>, vector<8x3xf32>
      %cst_36 = arith.constant dense<0.000000e+00> : vector<3xf32>
      %111 = vector.multi_reduction <add>, %110, %cst_36 [0] : vector<8x3xf32> to vector<3xf32>
      %112 = vector.shape_cast %111 : vector<3xf32> to vector<1x3xf32>
      %113 = vector.shape_cast %112 : vector<1x3xf32> to vector<1x1x3xf32>
      %c0_37 = arith.constant 0 : index
      %c0_38 = arith.constant 0 : index
      %c0_39 = arith.constant 0 : index
      %114 = vector.load %arg4[%c0_37, %c0_38, %c0_39] : memref<1x1x3xf32, #tpu.memory_space<vmem>>, vector<1x1x3xf32>
      tpu.vector_store %arg4[%c0_37, %c0_38, %c0_39], %113 {strides = array<i32>} : memref<1x1x3xf32, #tpu.memory_space<vmem>>, vector<1x1x3xf32>,
    } else {
    }
    return
  }
  func.func @transform_0(%arg0: i32, %arg1: i32) -> (i32, i32) {
    %c1_i32 = arith.constant 1 : i32
    %0 = arith.muli %arg0, %c1_i32 : i32
    %1 = arith.addi %0, %arg1 : i32
    %c0_i32 = arith.constant 0 : i32
    %2 = arith.minsi %1, %c0_i32 : i32
    %c0_i32_0 = arith.constant 0 : i32
    %c0_i32_1 = arith.constant 0 : i32
    return %2, %c0_i32_0 : i32, i32
  }
  func.func @transform_1(%arg0: i32, %arg1: i32) -> (i32, i32) {
    %c1_i32 = arith.constant 1 : i32
    %0 = arith.muli %arg0, %c1_i32 : i32
    %1 = arith.addi %0, %arg1 : i32
    %c0_i32 = arith.constant 0 : i32
    %2 = arith.minsi %1, %c0_i32 : i32
    %c0_i32_0 = arith.constant 0 : i32
    %c0_i32_1 = arith.constant 0 : i32
    return %2, %c0_i32_0 : i32, i32
  }
  func.func @transform_2(%arg0: i32, %arg1: i32) -> (i32, i32, i32) {
    %c0_i32 = arith.constant 0 : i32
    %c0_i32_0 = arith.constant 0 : i32
    %c0_i32_1 = arith.constant 0 : i32
    return %arg0, %c0_i32, %c0_i32_0 : i32, i32, i32
  }
}

</mosaic_0001>

<llo_original>
// kernel: tpu_custom_call.1
$region0: #{tpu_custom_call.1}
  #allocation0 [shape = 'u32[]', space=smem, size = 0x4, offset = 0x4, fixed_abs, tag = 'smem constant byte address 0x4 - core index']
  #allocation1 [shape = 'u32[144,128]{1,0:T(1,128)}', space=vmem, size = 0x12000, scoped, tag = 'internal scratch']
  #allocation2 [shape = 'f32[8,3]{1,0:T(8,128)}', space=vmem, size = 0x1000, scoped, tag = 'scratch operand']
  %s0 = inlined_call_operand.vmem [shape: f32[8,34], index: 0, kind: input, shape index: {}]
  %s1 = inlined_call_operand.vmem [shape: s32[8,3], index: 1, kind: input, shape index: {}]
  %s2 = inlined_call_operand.hbm [shape: f32[1,1,3], index: 2, kind: output, shape index: {}]
  %s3 = sld [smem:[#allocation0]]
  $region26: #{tpu_custom_call.1} parent=0
    _
  %s5 = ssub.s32 1, %s3
  %s6 = scalar_select 0, %s5, %s3
  $region1: #{tpu_custom_call.1} parent=0
    #allocation3 [shape = 'u8[512]{0}', space=vmem, size = 0x400, scoped, tag = 'output window, operand 0, single buffered']
    #allocation4 [shape = 's32[1]{0}', space=sflag, size = 0x4, scoped, tag = 'scoped memory for tpu_custom_call.1']
    %7 = vsyncpa [#allocation4], 0
    // Predicated region
    $region2: #{tpu_custom_call.1} parent=1 // pred_check
      _
    $region3: #{tpu_custom_call.1} parent=1 // pred_check_branch
      %9 = sbr.rel (0) target = $region5
    $region4: #{tpu_custom_call.1} parent=1 // pred_region
      %s10 = sadd.s32 0, 0
      %p11 = scmp.lt.s32.totalorder %s10, 0
      %s12 = scalar_select %p11, %s10, 0
      %p13 = scmp.lt.s32.totalorder %s12, 0
      %s14 = scalar_select %p13, %s12, 0
      %s15 = smul.addr %s14, 8
      %s16 = scalar_lea.vmem %s0, %s15
      %s17 = sadd.s32 0, 0
      %p18 = scmp.lt.s32.totalorder %s17, 0
      %s19 = scalar_select %p18, %s17, 0
    $region5: #{tpu_custom_call.1} parent=1 // pred_fallthru
      _
    // Predicated region
    $region6: #{tpu_custom_call.1} parent=1 // pred_check
      _
    $region7: #{tpu_custom_call.1} parent=1 // pred_check_branch
      %21 = sbr.rel (0) target = $region9
    $region8: #{tpu_custom_call.1} parent=1 // pred_region
      %s22 = sadd.s32 0, 0
      %p23 = scmp.lt.s32.totalorder %s22, 0
      %s24 = scalar_select %p23, %s22, 0
      %p25 = scmp.lt.s32.totalorder %s24, 0
      %s26 = scalar_select %p25, %s24, 0
      %s27 = smul.addr %s26, 8
      %s28 = scalar_lea.vmem %s1, %s27
      %s29 = sadd.s32 0, 0
      %p30 = scmp.lt.s32.totalorder %s29, 0
      %s31 = scalar_select %p30, %s29, 0
    $region9: #{tpu_custom_call.1} parent=1 // pred_fallthru
      _
    %s32 = sadd.s32 0, 0
    %p33 = scmp.lt.s32.totalorder %s32, 0
    %s34 = scalar_select %p33, %s32, 0
    %p35 = scmp.lt.s32.totalorder %s34, 0
    %s36 = scalar_select %p35, %s34, 0
    %s37 = smul.addr %s36, 8
    %s38 = scalar_lea.vmem %s0, %s37
    %s39 = sadd.s32 0, 0
    %p40 = scmp.lt.s32.totalorder %s39, 0
    %s41 = scalar_select %p40, %s39, 0
    %p42 = scmp.lt.s32.totalorder %s41, 0
    %s43 = scalar_select %p42, %s41, 0
    %s44 = smul.addr %s43, 8
    %s45 = scalar_lea.vmem %s1, %s44
    %s46 = sadd.s32 0, 0
    %p47 = scmp.lt.s32.totalorder %s46, 0
    %s48 = scalar_select %p47, %s46, 0
    %p49 = scmp.lt.s32.totalorder %s48, 0
    %s50 = scalar_select %p49, %s48, 0
    %s51 = smul.addr %s50, 8
    %s52 = scalar_lea.vmem %s0, %s51
    %s53 = sadd.s32 0, 0
    %p54 = scmp.lt.s32.totalorder %s53, 0
    %s55 = scalar_select %p54, %s53, 0
    %s56 = sadd.s32 0, 0
    %p57 = scmp.lt.s32.totalorder %s56, 0
    %s58 = scalar_select %p57, %s56, 0
    %p59 = scmp.lt.s32.totalorder %s58, 0
    %s60 = scalar_select %p59, %s58, 0
    %s61 = smul.addr %s60, 8
    %s62 = scalar_lea.vmem %s1, %s61
    %s63 = sadd.s32 0, 0
    %p64 = scmp.lt.s32.totalorder %s63, 0
    %s65 = scalar_select %p64, %s63, 0
    %p66 = scmp.eq.s32.totalorder 0, 0
    // Predicated region
    $region10: #{tpu_custom_call.1} parent=1 // pred_check
      %p67 = pneg %p66
    $region11: #{tpu_custom_call.1} parent=1 // pred_check_branch
      %69 = sbr.rel (%p67) target = $region13
    $region12: #{tpu_custom_call.1} parent=1 // pred_region
      %vm70 = vcmask 23552
      %71 = vst.msk [vmem:[#allocation2] sm:$0xff] %vm70, 0.0
    $region13: #{tpu_custom_call.1} parent=1 // pred_fallthru
      _
    %v72 = vld [vmem:[%s52] sm:$0xff]
    %v73 = vld [vmem:[%s62] sm:$0xff]
    %v74 = vlaneseq
    %v75 = vand.u32 %v74, 127
    %vm76 = vcmp.ge.s32.totalorder %v75, 0
    %vm77 = vcmp.lt.s32.totalorder %v75, 16
    %vm78 = vmand %vm76, %vm77
    %v79 = vsel %vm78, %v72, -3.4028235e+38
    %vm80 = vcmask 277504
    %v81 = vsel %vm80, %v79, -inf
    %82 = vmax.xlane.f32.xlu0 %v81
    %v83 = vpop.xlane.xlu0 %82
    %vm84 = vcmp.ge.s32.totalorder %v75, 16
    %vm85 = vcmp.lt.s32.totalorder %v75, 27
    %vm86 = vmand %vm84, %vm85
    %v87 = vsel %vm86, %v72, -3.4028235e+38
    %v88 = vsel %vm80, %v87, -inf
    %89 = vmax.xlane.f32.xlu0 %v88
    %v90 = vpop.xlane.xlu0 %89
    %vm91 = vcmp.ge.s32.totalorder %v75, 27
    %vm92 = vcmp.lt.s32.totalorder %v75, 34
    %vm93 = vmand %vm91, %vm92
    %v94 = vsel %vm93, %v72, -3.4028235e+38
    %v95 = vsel %vm80, %v94, -inf
    %96 = vmax.xlane.f32.xlu0 %v95
    %v97 = vpop.xlane.xlu0 %96
    %v98 = vsel %vm86, %v90, %v97
    %v99 = vsel %vm78, %v83, %v98
    %v100 = vsub.f32 %v72, %v99
    %v101 = vmul.f32 %v100, 1.442695
    %v102 = vpow.pop %v101
    %v103 = vsel %vm78, %v102, 0.0
    %v104 = vsel %vm80, %v103, 0.0
    %105 = vadd.xlane.f32.xlu0 %v104
    %v106 = vpop.xlane.xlu0 %105
    %v107 = vlog2.pop %v106
    %v108 = vmul.f32 %v107, 0.6931472
    %v109 = vadd.f32 %v108, %v83
    %110 = vset.pattern.permute.xlu0 0
    %111 = vperm.xlu0 %110, %v73
    %v112 = vpop.permute.xlu0 %111
    %vm113 = vcmp.eq.s32.totalorder %v75, %v112
    %v114 = vsel %vm113, %v72, 0.0
    %v115 = vsel %vm80, %v114, 0.0
    %116 = vadd.xlane.f32.xlu0 %v115
    %v117 = vpop.xlane.xlu0 %116
    %v118 = vsub.f32 %v109, %v117
    %v119 = vsel %vm86, %v102, 0.0
    %v120 = vsel %vm80, %v119, 0.0
    %121 = vadd.xlane.f32.xlu0 %v120
    %v122 = vpop.xlane.xlu0 %121
    %v123 = vlog2.pop %v122
    %v124 = vmul.f32 %v123, 0.6931472
    %v125 = vadd.f32 %v124, %v90
    %v126 = vadd.s32 %v73, 16
    %127 = vset.pattern.permute.xlu0 1
    %128 = vperm.xlu0 %127, %v126
    %v129 = vpop.permute.xlu0 %128
    %vm130 = vcmp.eq.s32.totalorder %v75, %v129
    %v131 = vsel %vm130, %v72, 0.0
    %v132 = vsel %vm80, %v131, 0.0
    %133 = vadd.xlane.f32.xlu0 %v132
    %v134 = vpop.xlane.xlu0 %133
    %v135 = vsub.f32 %v125, %v134
    %v136 = vsel %vm93, %v102, 0.0
    %v137 = vsel %vm80, %v136, 0.0
    %138 = vadd.xlane.f32.xlu0 %v137
    %v139 = vpop.xlane.xlu0 %138
    %v140 = vlog2.pop %v139
    %v141 = vmul.f32 %v140, 0.6931472
    %v142 = vadd.f32 %v141, %v97
    %v143 = vadd.s32 %v73, 27
    %144 = vset.pattern.permute.xlu0 2
    %145 = vperm.xlu0 %144, %v143
    %v146 = vpop.permute.xlu0 %145
    %vm147 = vcmp.eq.s32.totalorder %v75, %v146
    %v148 = vsel %vm147, %v72, 0.0
    %v149 = vsel %vm80, %v148, 0.0
    %150 = vadd.xlane.f32.xlu0 %v149
    %v151 = vpop.xlane.xlu0 %150
    %v152 = vsub.f32 %v142, %v151
    %vm153 = vcmp.eq.s32.totalorder %v75, 0
    %vm154 = vcmp.eq.s32.totalorder %v75, 1
    %v155 = vsel %vm154, %v135, %v152
    %v156 = vsel %vm153, %v118, %v155
    %v157 = vld [vmem:[#allocation2] sm:$0xff]
    %v158 = vadd.f32 %v157, %v156
    %vm159 = vcmask 23552
    %160 = vst.msk [vmem:[#allocation2] sm:$0xff] %vm159, %v158
    // Predicated region
    $region14: #{tpu_custom_call.1} parent=1 // pred_check
      %p161 = pneg %p66
    $region15: #{tpu_custom_call.1} parent=1 // pred_check_branch
      %163 = sbr.rel (%p161) target = $region17
    $region16: #{tpu_custom_call.1} parent=1 // pred_region
      %v164 = vld [vmem:[#allocation2] sm:$0xff]
      %v165 = vsel %vm159, %v164, 0.0
      %v166 = vrot.slane %v165, 4
      %v167 = vadd.f32 %v165, %v166
      %v168 = vrot.slane %v167, 2
      %v169 = vadd.f32 %v167, %v168
      %v170 = vrot.slane %v169, 1
      %v171 = vadd.f32 %v169, %v170
      %vm172 = vcmask 16384
      %173 = vst.msk [vmem:[#allocation3] sm:$0x1] %vm172, %v171
    $region17: #{tpu_custom_call.1} parent=1 // pred_fallthru
      _
    // Predicated region
    $region18: #{tpu_custom_call.1} parent=1 // pred_check
      _
    $region19: #{tpu_custom_call.1} parent=1 // pred_check_branch
      %175 = sbr.rel (0) target = $region21
    $region20: #{tpu_custom_call.1} parent=1 // pred_region
      %s177 = ssub.s32 16, 16
      %178 = vsyncadd [#allocation4], %s177
      %s180 = sshll.u32 [#allocation3], 4
      %s181 = int_to_ptr.vmem [resolvable:$true] %s180
      %183 = dma.vmem_to_hbm [thread:$0]  %s181, 16, %s2, [#allocation4]
    $region21: #{tpu_custom_call.1} parent=1 // pred_fallthru
      _
    // Predicated region
    $region22: #{tpu_custom_call.1} parent=1 // pred_check
      _
    $region23: #{tpu_custom_call.1} parent=1 // pred_check_branch
      %185 = sbr.rel (0) target = $region25
    $region24: #{tpu_custom_call.1} parent=1 // pred_region
      %186 = dma.done [#allocation4], 16
    $region25: #{tpu_custom_call.1} parent=1 // pred_fallthru
      _
    %187 = vsyncpa [#allocation4], 1

</llo_original>
